<compile_context>
chip_gen: v7x
topology: tpu7x:2x2x1
jax: 0.10.0
libtpu: 0.0.40
codegen_flags: <defaults>
</compile_context>

<pallas_src>
import jax
import jax.numpy as jnp
from jax.experimental import pallas as pl
from jax.experimental.pallas import tpu as pltpu

_LANE = 128
_TR_MAX = 1024        # rows per block (sweepable: 512 - 2048)
_NUM_CORES = 2        # leading 'parallel' axis (v7x megacore split)


def _round_up(x, m):
    return ((x + m - 1) // m) * m


def _as_rows(x):
    """Flatten row-major into a lane-dense (rows, 128) view, native dtype.

    The reshape is free for contiguous inputs.  A copying zero-pad only
    happens when numel % 128 != 0; since prediction and target both get the
    same zero tail, the pad contributes exactly 0 to the squared-error sum.
    """
    flat = x.reshape(-1)
    pad = (-flat.size) % _LANE
    if pad:
        flat = jnp.pad(flat, (0, pad))
    return flat.reshape(-1, _LANE)


def _make_kernel(w_m0, w_mv, rows_m0, rows_mv, tr, g2):
    """Kernel over grid (core p, row-block j); b = p*g2 + j is the row block."""
    n_m0 = len(w_m0)
    n_mv = len(w_mv)

    def kernel(*refs):
        preds_m0 = refs[:n_m0]
        preds_mv = refs[n_m0:n_m0 + n_mv]
        m0_ref = refs[n_m0 + n_mv]
        mv_ref = refs[n_m0 + n_mv + 1]
        out_ref = refs[-2]
        acc_ref = refs[-1]

        p = pl.program_id(0)
        j = pl.program_id(1)
        b = p * g2 + j                          # linear row-block index

        @pl.when(j == 0)
        def _():
            acc_ref[...] = jnp.zeros_like(acc_ref)

        # Sublane iota for masking rows past the (compile-time) valid row
        # count of each tensor family (handles ragged last block and the
        # clamped / duplicated blocks on the other core).
        row = jax.lax.broadcasted_iota(jnp.int32, (tr, _LANE), 0)

        def family(pred_refs, weights, tgt_ref, rows_fam):
            tgt = tgt_ref[...].astype(jnp.float32)
            contrib = jnp.zeros((tr, _LANE), jnp.float32)
            for pr, w in zip(pred_refs, weights):
                d = pr[...].astype(jnp.float32) - tgt
                contrib = contrib + jnp.float32(w) * (d * d)
            mask = (b * tr + row) < rows_fam
            return jnp.where(mask, contrib, 0.0)

        total = jnp.zeros((tr, _LANE), jnp.float32)
        if n_m0:
            total = total + family(preds_m0, w_m0, m0_ref, rows_m0)
        if n_mv:
            total = total + family(preds_mv, w_mv, mv_ref, rows_mv)
        acc_ref[...] += total                   # pure VPU FMA, overlaps DMA

        @pl.when(j == pl.num_programs(1) - 1)
        def _():
            # Single cross-lane reduction per core, at the end only.
            out_ref[...] = jnp.full(out_ref.shape,
                                    jnp.sum(acc_ref[...]), jnp.float32)

    return kernel


def dloss_func(m0p1, mvp1, m0p2, mvp2, m0p3, mvp3, m0, mv,
               a1=700.0, a2=800.0, a3=900.0,
               b1=0.5, b2=0.6, b3=0.75, lossit=1):
    """Pallas implementation of DLossFunc.forward (returns a scalar)."""
    # Trace-time pruning: only the terms with nonzero weight are streamed.
    if lossit == 1:
        m0_terms, mv_terms = [(m0p1, a1)], [(mvp1, b1)]
    elif lossit == 2:
        m0_terms, mv_terms = [(m0p2, a2)], [(mvp2, b2)]
    elif lossit == 3:
        m0_terms, mv_terms = [(m0p3, a3)], [(mvp3, b3)]
    else:  # lossit == 4 and the `else` branch are identical in PyTorch
        m0_terms = [(m0p1, a1), (m0p2, a2), (m0p3, a3)]
        mv_terms = [(mvp1, b1), (mvp2, b2), (mvp3, b3)]

    # Guard against silent size mismatches (mse_loss requires same shapes).
    for t, _ in m0_terms:
        assert t.shape == m0.shape, "m0 prediction/target shape mismatch"
    for t, _ in mv_terms:
        assert t.shape == mv.shape, "mv prediction/target shape mismatch"

    m0_2d = _as_rows(m0)
    mv_2d = _as_rows(mv)
    preds_m0 = [_as_rows(t) for t, _ in m0_terms]
    preds_mv = [_as_rows(t) for t, _ in mv_terms]
    w_m0 = [float(w) for _, w in m0_terms]
    w_mv = [float(w) for _, w in mv_terms]

    rows_m0 = m0_2d.shape[0]
    rows_mv = mv_2d.shape[0]
    # Biggest block that still fits both families (>=8 sublanes, <= _TR_MAX).
    tr = min(_TR_MAX, _round_up(min(rows_m0, rows_mv), 8))
    g_m0 = pl.cdiv(rows_m0, tr)
    g_mv = pl.cdiv(rows_mv, tr)
    g = max(g_m0, g_mv)
    g2 = pl.cdiv(g, _NUM_CORES)     # row-blocks per core

    def mk_map(g_fam):
        # Clamp so the DMA start is always in bounds; out-of-range blocks are
        # fully masked inside the kernel.
        return lambda p, j: (jnp.minimum(p * g2 + j, g_fam - 1), 0)

    in_specs = ([pl.BlockSpec((tr, _LANE), mk_map(g_m0)) for _ in preds_m0]
                + [pl.BlockSpec((tr, _LANE), mk_map(g_mv)) for _ in preds_mv]
                + [pl.BlockSpec((tr, _LANE), mk_map(g_m0)),
                   pl.BlockSpec((tr, _LANE), mk_map(g_mv))])

    kernel = _make_kernel(w_m0, w_mv, rows_m0, rows_mv, tr, g2)

    out = pl.pallas_call(
        kernel,
        out_shape=jax.ShapeDtypeStruct((_NUM_CORES, 8, _LANE), jnp.float32),
        grid=(_NUM_CORES, g2),
        in_specs=in_specs,
        out_specs=pl.BlockSpec((1, 8, _LANE), lambda p, j: (p, 0, 0)),
        scratch_shapes=[pltpu.VMEM((tr, _LANE), jnp.float32)],
        compiler_params=pltpu.CompilerParams(
            dimension_semantics=("parallel", "arbitrary")),
    )(*preds_m0, *preds_mv, m0_2d, mv_2d)

    # Sum the per-core partial losses.
    return jnp.sum(out[:, 0, 0])


def _reference(m0p1, mvp1, m0p2, mvp2, m0p3, mvp3, m0, mv,
               a1=700.0, a2=800.0, a3=900.0,
               b1=0.5, b2=0.6, b3=0.75, lossit=1):
    """Pure-JAX reference matching torch F.mse_loss(..., reduction='sum')."""
    def sse(a, b):
        d = a.astype(jnp.float32) - b.astype(jnp.float32)
        return jnp.sum(d * d)
    d1, e1 = sse(m0p1, m0), sse(mvp1, mv)
    d2, e2 = sse(m0p2, m0), sse(mvp2, mv)
    d3, e3 = sse(m0p3, m0), sse(mvp3, mv)
    if lossit == 1:
        return d1 * a1 + e1 * b1
    elif lossit == 2:
        return d2 * a2 + e2 * b2
    elif lossit == 3:
        return d3 * a3 + e3 * b3
    else:
        return d1 * a1 + e1 * b1 + d2 * a2 + e2 * b2 + d3 * a3 + e3 * b3


if __name__ == "__main__":
    key = jax.random.PRNGKey(0)
    shape = (2, 4, 16, 16)  # NCHW, small synthetic MRI-like volumes
    keys = jax.random.split(key, 8)
    m0p1, mvp1, m0p2, mvp2, m0p3, mvp3, m0, mv = (
        jax.random.normal(k, shape, dtype=jnp.float32) for k in keys)

    ok = True
    for lossit in (1, 2, 3, 4):
        got = jax.block_until_ready(
            dloss_func(m0p1, mvp1, m0p2, mvp2, m0p3, mvp3, m0, mv,
                       lossit=lossit))
        want = _reference(m0p1, mvp1, m0p2, mvp2, m0p3, mvp3, m0, mv,
                          lossit=lossit)
        if not jnp.allclose(got, want, rtol=1e-5, atol=1e-3):
            ok = False

    if ok:
        print("KERNEL_OK")
</pallas_src>

<mosaic_0001>
module attributes {stable_mosaic.version = 11 : i64} {
  func.func @kernel(%arg0: i32, %arg1: i32, %arg2: memref<16x128xf32, #tpu.memory_space<vmem>>, %arg3: memref<16x128xf32, #tpu.memory_space<vmem>>, %arg4: memref<16x128xf32, #tpu.memory_space<vmem>>, %arg5: memref<16x128xf32, #tpu.memory_space<vmem>>, %arg6: memref<1x8x128xf32, #tpu.memory_space<vmem>>, %arg7: memref<16x128xf32, #tpu.memory_space<vmem>>) attributes {dimension_semantics = [#tpu.dimension_semantics<parallel>, #tpu.dimension_semantics<arbitrary>], iteration_bounds = array<i64: 2, 1>, scalar_prefetch = 0 : i64, scratch_operands = 1 : i64, tpu.core_type = #tpu.core_type<tc>, window_params = [{transform_indices = @transform_0, window_bounds = array<i64: 16, 128>}, {transform_indices = @transform_1, window_bounds = array<i64: 16, 128>}, {transform_indices = @transform_2, window_bounds = array<i64: 16, 128>}, {transform_indices = @transform_3, window_bounds = array<i64: 16, 128>}, {transform_indices = @transform_4, window_bounds = array<i64: 1, 8, 128>}]} {
    %c1_i32 = arith.constant 1 : i32
    %0 = arith.muli %arg0, %c1_i32 : i32
    %1 = arith.addi %0, %arg1 : i32
    %c0_i32 = arith.constant 0 : i32
    %2 = arith.cmpi eq, %arg1, %c0_i32 : i32
    %3 = arith.extui %2 : i1 to i32
    %c0_i32_0 = arith.constant 0 : i32
    %4 = arith.cmpi ne, %3, %c0_i32_0 : i32
    scf.if %4 {
      %cst_23 = arith.constant 0.000000e+00 : f32
      %45 = vector.broadcast %cst_23 : f32 to vector<16x128xf32>
      %c0_24 = arith.constant 0 : index
      %c0_25 = arith.constant 0 : index
      %46 = vector.load %arg7[%c0_24, %c0_25] : memref<16x128xf32, #tpu.memory_space<vmem>>, vector<16x128xf32>
      tpu.vector_store %arg7[%c0_24, %c0_25], %45 {strides = array<i32>} : memref<16x128xf32, #tpu.memory_space<vmem>>, vector<16x128xf32>,
    } else {
    }
    %5 = tpu.iota {dimensions = array<i32: 0>} : vector<16x128xi32>
    %cst = arith.constant 0.000000e+00 : f32
    %6 = vector.broadcast %cst : f32 to vector<16x128xf32>
    %c0 = arith.constant 0 : index
    %c0_1 = arith.constant 0 : index
    %7 = vector.load %arg4[%c0, %c0_1] : memref<16x128xf32, #tpu.memory_space<vmem>>, vector<16x128xf32>
    %cst_2 = arith.constant 0.000000e+00 : f32
    %8 = vector.broadcast %cst_2 : f32 to vector<16x128xf32>
    %c0_3 = arith.constant 0 : index
    %c0_4 = arith.constant 0 : index
    %9 = vector.load %arg2[%c0_3, %c0_4] : memref<16x128xf32, #tpu.memory_space<vmem>>, vector<16x128xf32>
    %10 = arith.subf %9, %7 : vector<16x128xf32>
    %11 = arith.mulf %10, %10 : vector<16x128xf32>
    %cst_5 = arith.constant 7.000000e+02 : f32
    %12 = vector.broadcast %cst_5 : f32 to vector<16x128xf32>
    %13 = arith.mulf %12, %11 : vector<16x128xf32>
    %14 = arith.addf %8, %13 : vector<16x128xf32>
    %c16_i32 = arith.constant 16 : i32
    %15 = arith.muli %1, %c16_i32 : i32
    %16 = vector.broadcast %15 : i32 to vector<16x128xi32>
    %17 = arith.addi %16, %5 : vector<16x128xi32>
    %c16_i32_6 = arith.constant 16 : i32
    %18 = vector.broadcast %c16_i32_6 : i32 to vector<16x128xi32>
    %19 = arith.cmpi slt, %17, %18 : vector<16x128xi32>
    %cst_7 = arith.constant 0.000000e+00 : f32
    %20 = vector.broadcast %cst_7 : f32 to vector<16x128xf32>
    %21 = arith.select %19, %14, %20 : vector<16x128xi1>, vector<16x128xf32>
    %22 = arith.addf %6, %21 : vector<16x128xf32>
    %c0_8 = arith.constant 0 : index
    %c0_9 = arith.constant 0 : index
    %23 = vector.load %arg5[%c0_8, %c0_9] : memref<16x128xf32, #tpu.memory_space<vmem>>, vector<16x128xf32>
    %cst_10 = arith.constant 0.000000e+00 : f32
    %24 = vector.broadcast %cst_10 : f32 to vector<16x128xf32>
    %c0_11 = arith.constant 0 : index
    %c0_12 = arith.constant 0 : index
    %25 = vector.load %arg3[%c0_11, %c0_12] : memref<16x128xf32, #tpu.memory_space<vmem>>, vector<16x128xf32>
    %26 = arith.subf %25, %23 : vector<16x128xf32>
    %27 = arith.mulf %26, %26 : vector<16x128xf32>
    %cst_13 = arith.constant 5.000000e-01 : f32
    %28 = vector.broadcast %cst_13 : f32 to vector<16x128xf32>
    %29 = arith.mulf %28, %27 : vector<16x128xf32>
    %30 = arith.addf %24, %29 : vector<16x128xf32>
    %c16_i32_14 = arith.constant 16 : i32
    %31 = arith.muli %1, %c16_i32_14 : i32
    %32 = vector.broadcast %31 : i32 to vector<16x128xi32>
    %33 = arith.addi %32, %5 : vector<16x128xi32>
    %c16_i32_15 = arith.constant 16 : i32
    %34 = vector.broadcast %c16_i32_15 : i32 to vector<16x128xi32>
    %35 = arith.cmpi slt, %33, %34 : vector<16x128xi32>
    %cst_16 = arith.constant 0.000000e+00 : f32
    %36 = vector.broadcast %cst_16 : f32 to vector<16x128xf32>
    %37 = arith.select %35, %30, %36 : vector<16x128xi1>, vector<16x128xf32>
    %38 = arith.addf %22, %37 : vector<16x128xf32>
    %c0_17 = arith.constant 0 : index
    %c0_18 = arith.constant 0 : index
    %39 = vector.load %arg7[%c0_17, %c0_18] : memref<16x128xf32, #tpu.memory_space<vmem>>, vector<16x128xf32>
    %40 = arith.addf %39, %38 : vector<16x128xf32>
    %c0_19 = arith.constant 0 : index
    %c0_20 = arith.constant 0 : index
    %41 = vector.load %arg7[%c0_19, %c0_20] : memref<16x128xf32, #tpu.memory_space<vmem>>, vector<16x128xf32>
    tpu.vector_store %arg7[%c0_19, %c0_20], %40 {strides = array<i32>} : memref<16x128xf32, #tpu.memory_space<vmem>>, vector<16x128xf32>,
    %c0_i32_21 = arith.constant 0 : i32
    %42 = arith.cmpi eq, %arg1, %c0_i32_21 : i32
    %43 = arith.extui %42 : i1 to i32
    %c0_i32_22 = arith.constant 0 : i32
    %44 = arith.cmpi ne, %43, %c0_i32_22 : i32
    scf.if %44 {
      %c0_23 = arith.constant 0 : index
      %c0_24 = arith.constant 0 : index
      %45 = vector.load %arg7[%c0_23, %c0_24] : memref<16x128xf32, #tpu.memory_space<vmem>>, vector<16x128xf32>
      %46 = vector.shape_cast %45 : vector<16x128xf32> to vector<1x16x128xf32>
      %cst_25 = arith.constant dense<0.000000e+00> : vector<1xf32>
      %47 = vector.multi_reduction <add>, %46, %cst_25 [1, 2] : vector<1x16x128xf32> to vector<1xf32>
      %48 = vector.shape_cast %47 : vector<1xf32> to vector<1x1x1xf32>
      %49 = vector.extract %48[0, 0, 0] : f32 from vector<1x1x1xf32>
      %50 = vector.broadcast %49 : f32 to vector<1x8x128xf32>
      %c0_26 = arith.constant 0 : index
      %c0_27 = arith.constant 0 : index
      %c0_28 = arith.constant 0 : index
      %51 = vector.load %arg6[%c0_26, %c0_27, %c0_28] : memref<1x8x128xf32, #tpu.memory_space<vmem>>, vector<1x8x128xf32>
      tpu.vector_store %arg6[%c0_26, %c0_27, %c0_28], %50 {strides = array<i32>} : memref<1x8x128xf32, #tpu.memory_space<vmem>>, vector<1x8x128xf32>,
    } else {
    }
    return
  }
  func.func @transform_0(%arg0: i32, %arg1: i32) -> (i32, i32) {
    %c1_i32 = arith.constant 1 : i32
    %0 = arith.muli %arg0, %c1_i32 : i32
    %1 = arith.addi %0, %arg1 : i32
    %c0_i32 = arith.constant 0 : i32
    %2 = arith.minsi %1, %c0_i32 : i32
    %c0_i32_0 = arith.constant 0 : i32
    %c0_i32_1 = arith.constant 0 : i32
    return %2, %c0_i32_0 : i32, i32
  }
  func.func @transform_1(%arg0: i32, %arg1: i32) -> (i32, i32) {
    %c1_i32 = arith.constant 1 : i32
    %0 = arith.muli %arg0, %c1_i32 : i32
    %1 = arith.addi %0, %arg1 : i32
    %c0_i32 = arith.constant 0 : i32
    %2 = arith.minsi %1, %c0_i32 : i32
    %c0_i32_0 = arith.constant 0 : i32
    %c0_i32_1 = arith.constant 0 : i32
    return %2, %c0_i32_0 : i32, i32
  }
  func.func @transform_2(%arg0: i32, %arg1: i32) -> (i32, i32) {
    %c1_i32 = arith.constant 1 : i32
    %0 = arith.muli %arg0, %c1_i32 : i32
    %1 = arith.addi %0, %arg1 : i32
    %c0_i32 = arith.constant 0 : i32
    %2 = arith.minsi %1, %c0_i32 : i32
    %c0_i32_0 = arith.constant 0 : i32
    %c0_i32_1 = arith.constant 0 : i32
    return %2, %c0_i32_0 : i32, i32
  }
  func.func @transform_3(%arg0: i32, %arg1: i32) -> (i32, i32) {
    %c1_i32 = arith.constant 1 : i32
    %0 = arith.muli %arg0, %c1_i32 : i32
    %1 = arith.addi %0, %arg1 : i32
    %c0_i32 = arith.constant 0 : i32
    %2 = arith.minsi %1, %c0_i32 : i32
    %c0_i32_0 = arith.constant 0 : i32
    %c0_i32_1 = arith.constant 0 : i32
    return %2, %c0_i32_0 : i32, i32
  }
  func.func @transform_4(%arg0: i32, %arg1: i32) -> (i32, i32, i32) {
    %c0_i32 = arith.constant 0 : i32
    %c0_i32_0 = arith.constant 0 : i32
    %c0_i32_1 = arith.constant 0 : i32
    return %arg0, %c0_i32, %c0_i32_0 : i32, i32, i32
  }
}

</mosaic_0001>

<llo_original>
// kernel: tpu_custom_call.1
$region0: #{tpu_custom_call.1}
  #allocation0 [shape = 'u32[]', space=smem, size = 0x4, offset = 0x4, fixed_abs, tag = 'smem constant byte address 0x4 - core index']
  #allocation1 [shape = 'u32[144,128]{1,0:T(1,128)}', space=vmem, size = 0x12000, scoped, tag = 'internal scratch']
  #allocation2 [shape = 'f32[16,128]{1,0:T(8,128)}', space=vmem, size = 0x2000, scoped, tag = 'scratch operand']
  %s0 = inlined_call_operand.hbm [shape: f32[16,128], index: 0, kind: input, shape index: {}]
  %s1 = inlined_call_operand.hbm [shape: f32[16,128], index: 1, kind: input, shape index: {}]
  %s2 = inlined_call_operand.hbm [shape: f32[16,128], index: 2, kind: input, shape index: {}]
  %s3 = inlined_call_operand.hbm [shape: f32[16,128], index: 3, kind: input, shape index: {}]
  %s4 = inlined_call_operand.hbm [shape: f32[2,8,128], index: 4, kind: output, shape index: {}]
  %s5 = sld [smem:[#allocation0]]
  $region73: #{tpu_custom_call.1} parent=0
    _
  %s7 = ssub.s32 1, %s5
  %s8 = scalar_select 0, %s7, %s5
  $region1: #{tpu_custom_call.1} parent=0
    #allocation3 [shape = 'u8[16384]{0}', space=vmem, size = 0x4000, scoped, tag = 'input window, operand 0']
    #allocation4 [shape = 's32[2]{0}', space=sflag, size = 0x8, scoped, tag = 'scoped memory for tpu_custom_call.1']
    #allocation5 [shape = 's32[2]{0}', space=sflag, size = 0x8, scoped, tag = 'scoped memory for tpu_custom_call.1']
    #allocation6 [shape = 'u8[16384]{0}', space=vmem, size = 0x4000, scoped, tag = 'input window, operand 1']
    #allocation7 [shape = 's32[2]{0}', space=sflag, size = 0x8, scoped, tag = 'scoped memory for tpu_custom_call.1']
    #allocation8 [shape = 'u8[16384]{0}', space=vmem, size = 0x4000, scoped, tag = 'input window, operand 2']
    #allocation9 [shape = 'u8[16384]{0}', space=vmem, size = 0x4000, scoped, tag = 'input window, operand 3']
    #allocation10 [shape = 's32[2]{0}', space=sflag, size = 0x8, scoped, tag = 'scoped memory for tpu_custom_call.1']
    #allocation11 [shape = 'u8[8192]{0}', space=vmem, size = 0x2000, scoped, tag = 'output window, operand 0']
    %9 = vsyncpa [#allocation4], 0
    %s10 = scalar_lea.sflag [#allocation4], 1
    %11 = vsyncpa %s10, 0
    %12 = vsyncpa [#allocation7], 0
    %s13 = scalar_lea.sflag [#allocation7], 1
    %14 = vsyncpa %s13, 0
    %15 = vsyncpa [#allocation10], 0
    %s16 = scalar_lea.sflag [#allocation10], 1
    %17 = vsyncpa %s16, 0
    %18 = vsyncpa [#allocation5], 0
    %s19 = scalar_lea.sflag [#allocation5], 1
    %20 = vsyncpa %s19, 0
    loop: start=0, step=1, limit=4
    $region2: #{tpu_custom_call.1} parent=1 // loop_pre_header
      _
    $region3: #{tpu_custom_call.1} parent=1 // loop_header
      %s22 = sphi 0, %s26
      %p23 = scmp.ge.s32.totalorder %s22, 4
      %s29 = sphi 0, %s41
      %s30 = sphi 0, %s37
      %s31 = sphi 0, %s29
      %s32 = sphi 0, %s30
      %s33 = sphi 0, %s31
      %s34 = sphi 0, %s32
      %s50 = sphi 0, %s52
      %s53 = sphi 0, %s50
      %s54 = sphi 0, %s53
      %s70 = sphi 0, %s54
      %s82 = sphi 0, %s84
      %s85 = sphi 0, %s82
      %s86 = sphi 0, %s85
      %s102 = sphi 0, %s86
      %s114 = sphi 0, %s116
      %s117 = sphi 0, %s114
      %s118 = sphi 0, %s117
      %s134 = sphi 0, %s118
      %s146 = sphi 0, %s148
      %s149 = sphi 0, %s146
      %s150 = sphi 0, %s149
      %s166 = sphi 0, %s150
      %s172 = sphi 0, %s174
      %s175 = sphi 0, %s172
      %s176 = sphi 0, %s175
      %s192 = sphi 0, %s176
    $region4: #{tpu_custom_call.1} parent=1 // loop_header_branch
      %25 = sbr.rel (%p23) target = $region8
    $region5: #{tpu_custom_call.1} parent=1 // loop_body
      %s27 = ssub.s32 %s22, 1
      %s28 = ssub.s32 %s22, 2
      %s35 = sadd.s32 1, %s30
      %p36 = scmp.ge.s32.totalorder %s35, 1
      %s37 = scalar_select %p36, 0, %s35
      %s38 = sadd.s32 1, %s29
      %s39 = scalar_select %p36, %s38, %s29
      %p40 = scmp.ge.s32.totalorder %s39, 2
      %s41 = scalar_select %p40, 0, %s39
      %s42 = sadd.s32 %s29, %s30
      %p43 = scmp.lt.s32.totalorder %s42, 0
      %s44 = scalar_select %p43, %s42, 0
      %s45 = sadd.s32 %s41, %s37
      %p46 = scmp.lt.s32.totalorder %s45, 0
      %s47 = scalar_select %p46, %s45, 0
      %s48 = ssub.s32 %s44, %s47
      %p49 = scmp.eq.s32.totalorder %s48, 0
      %s51 = sadd.s32 %s50, 1
      %s52 = scalar_select %p49, %s50, %s51
      %p55 = pneg %p49
      %p56 = scmp.eq.s32.totalorder %s22, 1
      %p57 = por %p55, %p56
      %p58 = scmp.ne.s32.totalorder %s50, %s53
      %p59 = scmp.eq.s32.totalorder %s22, 0
      %p60 = por %p58, %p59
      %p61 = scmp.ne.s32.totalorder %s50, %s53
      %p62 = scmp.eq.s32.totalorder %s27, 1
      %p63 = por %p61, %p62
      %p64 = scmp.ne.s32.totalorder %s53, %s54
      %p65 = scmp.eq.s32.totalorder %s27, 0
      %p66 = por %p64, %p65
      %p67 = scmp.ne.s32.totalorder %s53, %s54
      %p68 = scmp.eq.s32.totalorder %s28, 1
      %p69 = por %p67, %p68
      %p71 = scmp.ne.s32.totalorder %s54, %s70
      %p72 = scmp.eq.s32.totalorder %s28, 0
      %p73 = por %p71, %p72
      %s74 = sadd.s32 %s29, %s30
      %p75 = scmp.lt.s32.totalorder %s74, 0
      %s76 = scalar_select %p75, %s74, 0
      %s77 = sadd.s32 %s41, %s37
      %p78 = scmp.lt.s32.totalorder %s77, 0
      %s79 = scalar_select %p78, %s77, 0
      %s80 = ssub.s32 %s76, %s79
      %p81 = scmp.eq.s32.totalorder %s80, 0
      %s83 = sadd.s32 %s82, 1
      %s84 = scalar_select %p81, %s82, %s83
      %p87 = pneg %p81
      %p88 = scmp.eq.s32.totalorder %s22, 1
      %p89 = por %p87, %p88
      %p90 = scmp.ne.s32.totalorder %s82, %s85
      %p91 = scmp.eq.s32.totalorder %s22, 0
      %p92 = por %p90, %p91
      %p93 = scmp.ne.s32.totalorder %s82, %s85
      %p94 = scmp.eq.s32.totalorder %s27, 1
      %p95 = por %p93, %p94
      %p96 = scmp.ne.s32.totalorder %s85, %s86
      %p97 = scmp.eq.s32.totalorder %s27, 0
      %p98 = por %p96, %p97
      %p99 = scmp.ne.s32.totalorder %s85, %s86
      %p100 = scmp.eq.s32.totalorder %s28, 1
      %p101 = por %p99, %p100
      %p103 = scmp.ne.s32.totalorder %s86, %s102
      %p104 = scmp.eq.s32.totalorder %s28, 0
      %p105 = por %p103, %p104
      %s106 = sadd.s32 %s29, %s30
      %p107 = scmp.lt.s32.totalorder %s106, 0
      %s108 = scalar_select %p107, %s106, 0
      %s109 = sadd.s32 %s41, %s37
      %p110 = scmp.lt.s32.totalorder %s109, 0
      %s111 = scalar_select %p110, %s109, 0
      %s112 = ssub.s32 %s108, %s111
      %p113 = scmp.eq.s32.totalorder %s112, 0
      %s115 = sadd.s32 %s114, 1
      %s116 = scalar_select %p113, %s114, %s115
      %p119 = pneg %p113
      %p120 = scmp.eq.s32.totalorder %s22, 1
      %p121 = por %p119, %p120
      %p122 = scmp.ne.s32.totalorder %s114, %s117
      %p123 = scmp.eq.s32.totalorder %s22, 0
      %p124 = por %p122, %p123
      %p125 = scmp.ne.s32.totalorder %s114, %s117
      %p126 = scmp.eq.s32.totalorder %s27, 1
      %p127 = por %p125, %p126
      %p128 = scmp.ne.s32.totalorder %s117, %s118
      %p129 = scmp.eq.s32.totalorder %s27, 0
      %p130 = por %p128, %p129
      %p131 = scmp.ne.s32.totalorder %s117, %s118
      %p132 = scmp.eq.s32.totalorder %s28, 1
      %p133 = por %p131, %p132
      %p135 = scmp.ne.s32.totalorder %s118, %s134
      %p136 = scmp.eq.s32.totalorder %s28, 0
      %p137 = por %p135, %p136
      %s138 = sadd.s32 %s29, %s30
      %p139 = scmp.lt.s32.totalorder %s138, 0
      %s140 = scalar_select %p139, %s138, 0
      %s141 = sadd.s32 %s41, %s37
      %p142 = scmp.lt.s32.totalorder %s141, 0
      %s143 = scalar_select %p142, %s141, 0
      %s144 = ssub.s32 %s140, %s143
      %p145 = scmp.eq.s32.totalorder %s144, 0
      %s147 = sadd.s32 %s146, 1
      %s148 = scalar_select %p145, %s146, %s147
      %p151 = pneg %p145
      %p152 = scmp.eq.s32.totalorder %s22, 1
      %p153 = por %p151, %p152
      %p154 = scmp.ne.s32.totalorder %s146, %s149
      %p155 = scmp.eq.s32.totalorder %s22, 0
      %p156 = por %p154, %p155
      %p157 = scmp.ne.s32.totalorder %s146, %s149
      %p158 = scmp.eq.s32.totalorder %s27, 1
      %p159 = por %p157, %p158
      %p160 = scmp.ne.s32.totalorder %s149, %s150
      %p161 = scmp.eq.s32.totalorder %s27, 0
      %p162 = por %p160, %p161
      %p163 = scmp.ne.s32.totalorder %s149, %s150
      %p164 = scmp.eq.s32.totalorder %s28, 1
      %p165 = por %p163, %p164
      %p167 = scmp.ne.s32.totalorder %s150, %s166
      %p168 = scmp.eq.s32.totalorder %s28, 0
      %p169 = por %p167, %p168
      %s170 = ssub.s32 %s29, %s41
      %p171 = scmp.eq.s32.totalorder %s170, 0
      %s173 = sadd.s32 %s172, 1
      %s174 = scalar_select %p171, %s172, %s173
      %p177 = pneg %p171
      %p178 = scmp.eq.s32.totalorder %s22, 1
      %p179 = por %p177, %p178
      %p180 = scmp.ne.s32.totalorder %s172, %s175
      %p181 = scmp.eq.s32.totalorder %s22, 0
      %p182 = por %p180, %p181
      %p183 = scmp.ne.s32.totalorder %s172, %s175
      %p184 = scmp.eq.s32.totalorder %s27, 1
      %p185 = por %p183, %p184
      %p186 = scmp.ne.s32.totalorder %s175, %s176
      %p187 = scmp.eq.s32.totalorder %s27, 0
      %p188 = por %p186, %p187
      %p189 = scmp.ne.s32.totalorder %s175, %s176
      %p190 = scmp.eq.s32.totalorder %s28, 1
      %p191 = por %p189, %p190
      %p193 = scmp.ne.s32.totalorder %s176, %s192
      %p194 = scmp.eq.s32.totalorder %s28, 0
      %p195 = por %p193, %p194
      %p196 = scmp.le.s32.totalorder 1, %s22
      %p197 = scmp.lt.s32.totalorder %s22, 3
      %p198 = pnand %p196, %p197
      %p199 = pneg %p198
      // Predicated region
      $region9: #{tpu_custom_call.1} parent=5 // pred_check
        _
      $region10: #{tpu_custom_call.1} parent=5 // pred_check_branch
        %201 = sbr.rel (%p198) target = $region12
      $region11: #{tpu_custom_call.1} parent=5 // pred_region
        %s202 = ssub.s32 %s22, 1
      $region12: #{tpu_custom_call.1} parent=5 // pred_fallthru
        _
      %p203 = scmp.lt.s32.totalorder %s22, 2
      // Predicated region
      $region13: #{tpu_custom_call.1} parent=5 // pred_check
        %p204 = pneg %p203
      $region14: #{tpu_custom_call.1} parent=5 // pred_check_branch
        %206 = sbr.rel (%p204) target = $region16
      $region15: #{tpu_custom_call.1} parent=5 // pred_region
        // Predicated region
        $region17: #{tpu_custom_call.1} parent=15 // pred_check
          %p207 = pneg %p60
        $region18: #{tpu_custom_call.1} parent=15 // pred_check_branch
          %209 = sbr.rel (%p207) target = $region20
        $region19: #{tpu_custom_call.1} parent=15 // pred_region
          %s210 = sand.u32 %s50, 1
          %s211 = scalar_lea.sflag [#allocation4], %s210
          %s212 = sand.u32 %s50, 1
          %s213 = smul.addr %s212, 16
          %s214 = scalar_lea.vmem [#allocation3], %s213
          %s215 = sadd.s32 %s29, %s30
          %p216 = scmp.lt.s32.totalorder %s215, 0
          %s217 = scalar_select %p216, %s215, 0
          %s218 = smul.u32 2, %s217
          %s220 = ssub.s32 256, 256
          %221 = vsyncadd %s211, %s220
          %s222 = smul.addr %s218, 128
          %s223 = scalar_lea.hbm %s0, %s222
          %s224 = sshll.u32 %s214, 4
          %s225 = int_to_ptr.vmem [resolvable:$true] %s224
          %230 = dma.hbm_to_vmem [thread:$0]  %s223, 256, %s225, %s211, 128, 128, 8
        $region20: #{tpu_custom_call.1} parent=15 // pred_fallthru
          _
        // Predicated region
        $region21: #{tpu_custom_call.1} parent=15 // pred_check
          %p231 = pneg %p92
        $region22: #{tpu_custom_call.1} parent=15 // pred_check_branch
          %233 = sbr.rel (%p231) target = $region24
        $region23: #{tpu_custom_call.1} parent=15 // pred_region
          %s234 = sand.u32 %s22, 1
          %s235 = scalar_lea.sflag [#allocation7], %s234
          %s236 = sand.u32 %s82, 1
          %s237 = smul.addr %s236, 16
          %s238 = scalar_lea.vmem [#allocation6], %s237
          %s239 = sadd.s32 %s29, %s30
          %p240 = scmp.lt.s32.totalorder %s239, 0
          %s241 = scalar_select %p240, %s239, 0
          %s242 = smul.u32 2, %s241
          %s244 = ssub.s32 256, 256
          %245 = vsyncadd %s235, %s244
          %s246 = smul.addr %s242, 128
          %s247 = scalar_lea.hbm %s1, %s246
          %s248 = sshll.u32 %s238, 4
          %s249 = int_to_ptr.vmem [resolvable:$true] %s248
          %254 = dma.hbm_to_vmem [thread:$0]  %s247, 256, %s249, %s235, 128, 128, 8
        $region24: #{tpu_custom_call.1} parent=15 // pred_fallthru
          _
        // Predicated region
        $region25: #{tpu_custom_call.1} parent=15 // pred_check
          %p255 = pneg %p124
        $region26: #{tpu_custom_call.1} parent=15 // pred_check_branch
          %257 = sbr.rel (%p255) target = $region28
        $region27: #{tpu_custom_call.1} parent=15 // pred_region
          %s258 = sand.u32 %s22, 1
          %s259 = scalar_lea.sflag [#allocation7], %s258
          %s260 = sand.u32 %s114, 1
          %s261 = smul.addr %s260, 16
          %s262 = scalar_lea.vmem [#allocation8], %s261
          %s263 = sadd.s32 %s29, %s30
          %p264 = scmp.lt.s32.totalorder %s263, 0
          %s265 = scalar_select %p264, %s263, 0
          %s266 = smul.u32 2, %s265
          %s268 = ssub.s32 256, 256
          %269 = vsyncadd %s259, %s268
          %s270 = smul.addr %s266, 128
          %s271 = scalar_lea.hbm %s2, %s270
          %s272 = sshll.u32 %s262, 4
          %s273 = int_to_ptr.vmem [resolvable:$true] %s272
          %278 = dma.hbm_to_vmem [thread:$0]  %s271, 256, %s273, %s259, 128, 128, 8
        $region28: #{tpu_custom_call.1} parent=15 // pred_fallthru
          _
        // Predicated region
        $region29: #{tpu_custom_call.1} parent=15 // pred_check
          %p279 = pneg %p156
        $region30: #{tpu_custom_call.1} parent=15 // pred_check_branch
          %281 = sbr.rel (%p279) target = $region32
        $region31: #{tpu_custom_call.1} parent=15 // pred_region
          %s282 = sand.u32 %s146, 1
          %s283 = scalar_lea.sflag [#allocation10], %s282
          %s284 = sand.u32 %s146, 1
          %s285 = smul.addr %s284, 16
          %s286 = scalar_lea.vmem [#allocation9], %s285
          %s287 = sadd.s32 %s29, %s30
          %p288 = scmp.lt.s32.totalorder %s287, 0
          %s289 = scalar_select %p288, %s287, 0
          %s290 = smul.u32 2, %s289
          %s292 = ssub.s32 256, 256
          %293 = vsyncadd %s283, %s292
          %s294 = smul.addr %s290, 128
          %s295 = scalar_lea.hbm %s3, %s294
          %s296 = sshll.u32 %s286, 4
          %s297 = int_to_ptr.vmem [resolvable:$true] %s296
          %302 = dma.hbm_to_vmem [thread:$0]  %s295, 256, %s297, %s283, 128, 128, 8
        $region32: #{tpu_custom_call.1} parent=15 // pred_fallthru
          _
      $region16: #{tpu_custom_call.1} parent=5 // pred_fallthru
        _
      %p303 = scmp.le.s32.totalorder 1, %s22
      %p304 = scmp.lt.s32.totalorder %s22, 3
      %p305 = pnand %p303, %p304
      %p306 = pneg %p305
      // Predicated region
      $region33: #{tpu_custom_call.1} parent=5 // pred_check
        _
      $region34: #{tpu_custom_call.1} parent=5 // pred_check_branch
        %308 = sbr.rel (%p305) target = $region36
      $region35: #{tpu_custom_call.1} parent=5 // pred_region
        %s309 = ssub.s32 %s22, 1
        %s310 = sand.u32 %s53, 1
        %s311 = scalar_lea.sflag [#allocation4], %s310
        %s312 = sand.u32 %s53, 1
        %s313 = smul.addr %s312, 16
        %s314 = scalar_lea.vmem [#allocation3], %s313
        // Predicated region
        $region37: #{tpu_custom_call.1} parent=35 // pred_check
          %p315 = pneg %p66
        $region38: #{tpu_custom_call.1} parent=35 // pred_check_branch
          %317 = sbr.rel (%p315) target = $region40
        $region39: #{tpu_custom_call.1} parent=35 // pred_region
          %318 = dma.done %s311, 256
        $region40: #{tpu_custom_call.1} parent=35 // pred_fallthru
          _
        %s319 = sand.u32 %s27, 1
        %s320 = scalar_lea.sflag [#allocation7], %s319
        %s321 = sand.u32 %s85, 1
        %s322 = smul.addr %s321, 16
        %s323 = scalar_lea.vmem [#allocation6], %s322
        // Predicated region
        $region41: #{tpu_custom_call.1} parent=35 // pred_check
          %p324 = pneg %p98
        $region42: #{tpu_custom_call.1} parent=35 // pred_check_branch
          %326 = sbr.rel (%p324) target = $region44
        $region43: #{tpu_custom_call.1} parent=35 // pred_region
          %327 = dma.done %s320, 256
        $region44: #{tpu_custom_call.1} parent=35 // pred_fallthru
          _
        %s328 = sand.u32 %s27, 1
        %s329 = scalar_lea.sflag [#allocation7], %s328
        %s330 = sand.u32 %s117, 1
        %s331 = smul.addr %s330, 16
        %s332 = scalar_lea.vmem [#allocation8], %s331
        // Predicated region
        $region45: #{tpu_custom_call.1} parent=35 // pred_check
          %p333 = pneg %p130
        $region46: #{tpu_custom_call.1} parent=35 // pred_check_branch
          %335 = sbr.rel (%p333) target = $region48
        $region47: #{tpu_custom_call.1} parent=35 // pred_region
          %336 = dma.done %s329, 256
        $region48: #{tpu_custom_call.1} parent=35 // pred_fallthru
          _
        %s337 = sand.u32 %s149, 1
        %s338 = scalar_lea.sflag [#allocation10], %s337
        %s339 = sand.u32 %s149, 1
        %s340 = smul.addr %s339, 16
        %s341 = scalar_lea.vmem [#allocation9], %s340
        // Predicated region
        $region49: #{tpu_custom_call.1} parent=35 // pred_check
          %p342 = pneg %p162
        $region50: #{tpu_custom_call.1} parent=35 // pred_check_branch
          %344 = sbr.rel (%p342) target = $region52
        $region51: #{tpu_custom_call.1} parent=35 // pred_region
          %345 = dma.done %s338, 256
        $region52: #{tpu_custom_call.1} parent=35 // pred_fallthru
          _
        %s346 = sand.u32 %s53, 1
        %s347 = scalar_lea.sflag [#allocation4], %s346
        %s348 = sand.u32 %s53, 1
        %s349 = smul.addr %s348, 16
        %s350 = scalar_lea.vmem [#allocation3], %s349
        %p351 = pneg %p66
        %p352 = pneg %p63
        %s353 = sand.u32 %s27, 1
        %s354 = scalar_lea.sflag [#allocation7], %s353
        %s355 = sand.u32 %s85, 1
        %s356 = smul.addr %s355, 16
        %s357 = scalar_lea.vmem [#allocation6], %s356
        %p358 = pneg %p98
        %p359 = pneg %p95
        %s360 = sand.u32 %s27, 1
        %s361 = scalar_lea.sflag [#allocation7], %s360
        %s362 = sand.u32 %s117, 1
        %s363 = smul.addr %s362, 16
        %s364 = scalar_lea.vmem [#allocation8], %s363
        %p365 = pneg %p130
        %p366 = pneg %p127
        %s367 = sand.u32 %s149, 1
        %s368 = scalar_lea.sflag [#allocation10], %s367
        %s369 = sand.u32 %s149, 1
        %s370 = smul.addr %s369, 16
        %s371 = scalar_lea.vmem [#allocation9], %s370
        %p372 = pneg %p162
        %p373 = pneg %p159
        %p374 = pneg %p188
        %p375 = pneg %p185
        %s376 = sand.u32 %s175, 1
        %s377 = scalar_lea.sflag [#allocation5], %s376
        %s378 = sand.u32 %s175, 1
        %s379 = smul.addr %s378, 8
        %s380 = scalar_lea.vmem [#allocation11], %s379
        %s381 = sadd.s32 %s31, %s32
        %p382 = scmp.lt.s32.totalorder %s381, 0
        %s383 = scalar_select %p382, %s381, 0
        %s384 = smul.u32 2, %s383
        %s385 = sadd.s32 %s31, %s32
        %p386 = scmp.lt.s32.totalorder %s385, 0
        %s387 = scalar_select %p386, %s385, 0
        %s388 = smul.u32 2, %s387
        %s389 = sadd.s32 %s31, %s32
        %p390 = scmp.lt.s32.totalorder %s389, 0
        %s391 = scalar_select %p390, %s389, 0
        %s392 = smul.u32 2, %s391
        %s393 = sadd.s32 %s31, %s32
        %p394 = scmp.lt.s32.totalorder %s393, 0
        %s395 = scalar_select %p394, %s393, 0
        %s396 = smul.u32 2, %s395
        %s397 = sadd.s32 %s31, %s32
        %p398 = scmp.eq.s32.totalorder %s32, 0
        // Predicated region
        $region53: #{tpu_custom_call.1} parent=35 // pred_check
          %p399 = pneg %p398
        $region54: #{tpu_custom_call.1} parent=35 // pred_check_branch
          %401 = sbr.rel (%p399) target = $region56
        $region55: #{tpu_custom_call.1} parent=35 // pred_region
          %402 = vst [vmem:[#allocation2] sm:$0xff] 0.0
          %403 = vst [vmem:[#allocation2 + $0x8] sm:$0xff] 0.0
        $region56: #{tpu_custom_call.1} parent=35 // pred_fallthru
          _
        %v404 = vlaneseq
        %v405 = vshrl.u32 %v404, 7
        %v406 = vadd.s32 %v405, 8
        %v407 = vld [vmem:[%s332] sm:$0xff]
        %v408 = vld [vmem:[%s332 + $0x8] sm:$0xff]
        %v409 = vld [vmem:[%s314] sm:$0xff]
        %v410 = vld [vmem:[%s314 + $0x8] sm:$0xff]
        %v411 = vsub.f32 %v409, %v407
        %v412 = vsub.f32 %v410, %v408
        %v413 = vmul.f32 %v411, %v411
        %v414 = vmul.f32 %v412, %v412
        %v415 = vmul.f32 %v413, 700.0
        %v416 = vmul.f32 %v414, 700.0
        %v417 = vadd.f32 %v415, 0.0
        %v418 = vadd.f32 %v416, 0.0
        %s419 = smul.u32 %s397, 16
        %v420 = vstv %s419
        %v421 = vadd.s32 %v420, %v405
        %v422 = vadd.s32 %v420, %v406
        %vm423 = vcmp.lt.s32.totalorder %v421, 16
        %vm424 = vcmp.lt.s32.totalorder %v422, 16
        %v425 = vsel %vm423, %v417, 0.0
        %v426 = vsel %vm424, %v418, 0.0
        %v427 = vadd.f32 %v425, 0.0
        %v428 = vadd.f32 %v426, 0.0
        %v429 = vld [vmem:[%s341] sm:$0xff]
        %v430 = vld [vmem:[%s341 + $0x8] sm:$0xff]
        %v431 = vld [vmem:[%s323] sm:$0xff]
        %v432 = vld [vmem:[%s323 + $0x8] sm:$0xff]
        %v433 = vsub.f32 %v431, %v429
        %v434 = vsub.f32 %v432, %v430
        %v435 = vmul.f32 %v433, %v433
        %v436 = vmul.f32 %v434, %v434
        %v437 = vmul.f32 %v435, 0.5
        %v438 = vmul.f32 %v436, 0.5
        %v439 = vadd.f32 %v437, 0.0
        %v440 = vadd.f32 %v438, 0.0
        %v441 = vsel %vm423, %v439, 0.0
        %v442 = vsel %vm424, %v440, 0.0
        %v443 = vadd.f32 %v427, %v441
        %v444 = vadd.f32 %v428, %v442
        %v445 = vld [vmem:[#allocation2] sm:$0xff]
        %v446 = vld [vmem:[#allocation2 + $0x8] sm:$0xff]
        %v447 = vadd.f32 %v445, %v443
        %v448 = vadd.f32 %v446, %v444
        %449 = vst [vmem:[#allocation2] sm:$0xff] %v447
        %450 = vst [vmem:[#allocation2 + $0x8] sm:$0xff] %v448
        // Predicated region
        $region57: #{tpu_custom_call.1} parent=35 // pred_check
          %p451 = pneg %p398
        $region58: #{tpu_custom_call.1} parent=35 // pred_check_branch
          %453 = sbr.rel (%p451) target = $region60
        $region59: #{tpu_custom_call.1} parent=35 // pred_region
          %v454 = vld [vmem:[#allocation2] sm:$0xff]
          %v455 = vld [vmem:[#allocation2 + $0x8] sm:$0xff]
          %v456 = vadd.f32 %v454, %v455
          %457 = vadd.xlane.f32.xlu0 %v456
          %v458 = vpop.xlane.xlu0 %457
          %v459 = vrot.slane %v458, 4
          %v460 = vadd.f32 %v458, %v459
          %v461 = vrot.slane %v460, 2
          %v462 = vadd.f32 %v460, %v461
          %v463 = vrot.slane %v462, 1
          %v464 = vadd.f32 %v462, %v463
          %s465 = vtos %v464
          %v466 = vstv %s465
          %467 = vst [vmem:[%s380] sm:$0xff] %v466
        $region60: #{tpu_custom_call.1} parent=35 // pred_fallthru
          _
        %s468 = sand.u32 %s175, 1
        %s469 = scalar_lea.sflag [#allocation5], %s468
        %s470 = sand.u32 %s175, 1
        %s471 = smul.addr %s470, 8
        %s472 = scalar_lea.vmem [#allocation11], %s471
        // Predicated region
        $region61: #{tpu_custom_call.1} parent=35 // pred_check
          %p473 = pneg %p185
        $region62: #{tpu_custom_call.1} parent=35 // pred_check_branch
          %475 = sbr.rel (%p473) target = $region64
        $region63: #{tpu_custom_call.1} parent=35 // pred_region
          %s477 = ssub.s32 128, 128
          %478 = vsyncadd %s469, %s477
          %s479 = smul.addr %s31, 128
          %s480 = scalar_lea.hbm %s4, %s479
          %s482 = sshll.u32 %s472, 4
          %s483 = int_to_ptr.vmem [resolvable:$true] %s482
          %485 = dma.vmem_to_hbm [thread:$0]  %s483, 128, %s480, %s469
        $region64: #{tpu_custom_call.1} parent=35 // pred_fallthru
          _
      $region36: #{tpu_custom_call.1} parent=5 // pred_fallthru
        _
      %p486 = scmp.le.s32.totalorder 2, %s22
      // Predicated region
      $region65: #{tpu_custom_call.1} parent=5 // pred_check
        %p487 = pneg %p486
      $region66: #{tpu_custom_call.1} parent=5 // pred_check_branch
        %489 = sbr.rel (%p487) target = $region68
      $region67: #{tpu_custom_call.1} parent=5 // pred_region
        %s490 = ssub.s32 %s22, 2
        // Predicated region
        $region69: #{tpu_custom_call.1} parent=67 // pred_check
          %p491 = pneg %p191
        $region70: #{tpu_custom_call.1} parent=67 // pred_check_branch
          %493 = sbr.rel (%p491) target = $region72
        $region71: #{tpu_custom_call.1} parent=67 // pred_region
          %s494 = sand.u32 %s176, 1
          %s495 = scalar_lea.sflag [#allocation5], %s494
          %s496 = sand.u32 %s176, 1
          %s497 = smul.addr %s496, 8
          %s498 = scalar_lea.vmem [#allocation11], %s497
          %499 = dma.done %s495, 128
        $region72: #{tpu_custom_call.1} parent=67 // pred_fallthru
          _
      $region68: #{tpu_custom_call.1} parent=5 // pred_fallthru
        _
    $region6: #{tpu_custom_call.1} parent=1 // loop_footer
      %s26 = sadd.s32 1, %s22
    $region7: #{tpu_custom_call.1} parent=1 // loop_footer_branch
      %21 = sbr.rel target = $region3
    $region8: #{tpu_custom_call.1} parent=1 // loop_exit
      _
    %500 = vsyncpa [#allocation4], 1
    %s501 = scalar_lea.sflag [#allocation4], 1
    %502 = vsyncpa %s501, 1
    %503 = vsyncpa [#allocation7], 1
    %s504 = scalar_lea.sflag [#allocation7], 1
    %505 = vsyncpa %s504, 1
    %506 = vsyncpa [#allocation10], 1
    %s507 = scalar_lea.sflag [#allocation10], 1
    %508 = vsyncpa %s507, 1
    %509 = vsyncpa [#allocation5], 1
    %s510 = scalar_lea.sflag [#allocation5], 1
    %511 = vsyncpa %s510, 1

</llo_original>
